<compile_context>
chip_gen: v5e
topology: v5e:2x2
jax: 0.10.0
libtpu: 0.0.40
codegen_flags: <defaults>
</compile_context>

<pallas_src>
import math

import jax
import jax.numpy as jnp
from jax.experimental import pallas as pl
from jax.experimental.pallas import tpu as pltpu

X_DIM = 20                      # fixed by nn.Linear(20, 20)
D_PAD = 128                     # lane-dense padded feature dim
LOGVAR_CONST = math.log(2.0 / 3.0)
STD_CONST = math.sqrt(2.0 / 3.0)   # exp(0.5 * log(2/3))


def _round_up(x, m):
    return ((x + m - 1) // m) * m


def _iwae_kernel(x_ref, w_ref, b_ref, eps_ref, z_ref, mu_ref):
    # x_ref:   (TM, 128)      padded input tile
    # w_ref:   (128, 128)     padded linear weight (in, out), grid-resident
    # b_ref:   (1, 128)       padded bias, grid-resident
    # eps_ref: (K, TM, 128)   standard-normal noise tile
    # z_ref:   (K, TM, 128)   output particles tile
    # mu_ref:  (TM, 128)      output mean tile
    mu = jnp.dot(x_ref[...], w_ref[...],
                 preferred_element_type=jnp.float32) + b_ref[...]   # (TM, 128)
    mu_ref[...] = mu
    # z = eps * sqrt(2/3) + mu ; std folded as a compile-time constant so this
    # is a single VPU FMA per vreg, no exp / no temporaries.
    z_ref[...] = eps_ref[...] * jnp.float32(STD_CONST) + mu[None, :, :]


def iwae_forward(x, w_t, b, eps):
    """x: (B, 20) f32, w_t: (20, 20) f32 (pre-transposed: (in, out)),
    b: (20,) f32, eps: (K, B, 20) f32.  Returns (z, mu, logvar) matching the
    PyTorch module: shapes (K, B, 20), (1, B, 20), (1, B, 20)."""
    B, D = x.shape
    K = eps.shape[0]
    assert D == X_DIM

    # Batch tile: sublane-aligned (multiple of 8); 256-row tiles when the
    # batch is large (MXU-friendly on v6e/v7x, modest VMEM footprint).
    tm = 256 if B >= 256 else _round_up(B, 8)
    b_pad = _round_up(B, tm)
    grid = (b_pad // tm,)

    # Zero-pad to lane-dense / tile-aligned shapes.  Padded rows/cols of x and
    # w_t are zero, so padded mu columns are exactly zero and sliced away.
    x_p = jnp.zeros((b_pad, D_PAD), jnp.float32).at[:B, :D].set(x)
    w_p = jnp.zeros((D_PAD, D_PAD), jnp.float32).at[:D, :D].set(w_t)
    b_p = jnp.zeros((1, D_PAD), jnp.float32).at[0, :D].set(b)
    eps_p = jnp.zeros((K, b_pad, D_PAD), jnp.float32).at[:, :B, :D].set(eps)

    out_shapes = (
        jax.ShapeDtypeStruct((K, b_pad, D_PAD), jnp.float32),  # z (padded)
        jax.ShapeDtypeStruct((b_pad, D_PAD), jnp.float32),     # mu (padded)
    )
    in_specs = [
        pl.BlockSpec((tm, D_PAD), lambda i: (i, 0)),        # x tile
        pl.BlockSpec((D_PAD, D_PAD), lambda i: (0, 0)),     # weight, resident
        pl.BlockSpec((1, D_PAD), lambda i: (0, 0)),         # bias, resident
        pl.BlockSpec((K, tm, D_PAD), lambda i: (0, i, 0)),  # eps tile
    ]
    out_specs = (
        pl.BlockSpec((K, tm, D_PAD), lambda i: (0, i, 0)),  # z tile
        pl.BlockSpec((tm, D_PAD), lambda i: (i, 0)),        # mu tile
    )

    z_pad, mu_pad = pl.pallas_call(
        _iwae_kernel,
        out_shape=out_shapes,
        grid=grid,
        in_specs=in_specs,
        out_specs=out_specs,
        compiler_params=pltpu.CompilerParams(
            dimension_semantics=("parallel",),
        ),
    )(x_p, w_p, b_p, eps_p)

    z = z_pad[:, :B, :D]
    mu = mu_pad[None, :B, :D]
    # logvar is a pure constant -> build it in the wrapper (XLA constant), no
    # kernel output / HBM writeback needed.
    logvar = jnp.full((1, B, D), LOGVAR_CONST, dtype=jnp.float32)
    return z, mu, logvar


def reference_forward(x, w_t, b, eps):
    mu = x @ w_t + b[None, :]
    logvar = jnp.full_like(mu, LOGVAR_CONST)
    std = jnp.exp(0.5 * logvar)
    z = eps * std[None] + mu[None]
    return z, mu[None], logvar[None]


if __name__ == "__main__":
    key = jax.random.PRNGKey(0)
    k_x, k_w, k_b, k_eps = jax.random.split(key, 4)

    B = 2        # small batch
    K = 3        # number of IWAE particles
    D = X_DIM    # 20, fixed by the module

    x = jax.random.normal(k_x, (B, D), dtype=jnp.float32)
    # Deterministic synthetic Linear(20, 20) params (PyTorch weight is
    # (out, in); we store the transpose (in, out) directly).
    w_t = jax.random.normal(k_w, (D, D), dtype=jnp.float32) * 0.1
    b = jax.random.normal(k_b, (D,), dtype=jnp.float32) * 0.1
    # TODO(synk): eps is drawn host-side with jax.random (the torch.randn
    # inside reparametrize has no in-kernel equivalent here) and passed in.
    eps = jax.random.normal(k_eps, (K, B, D), dtype=jnp.float32)

    z, mu, logvar = jax.jit(iwae_forward)(x, w_t, b, eps)
    jax.block_until_ready((z, mu, logvar))

    # Sanity check against plain-JAX reference.
    z_ref, mu_ref, lv_ref = reference_forward(x, w_t, b, eps)
    assert z.shape == (K, B, D) and mu.shape == (1, B, D) and logvar.shape == (1, B, D)
    assert jnp.allclose(z, z_ref, atol=1e-5)
    assert jnp.allclose(mu, mu_ref, atol=1e-5)
    assert jnp.allclose(logvar, lv_ref, atol=1e-6)

    print("KERNEL_OK")
</pallas_src>

<mosaic_0001>
module attributes {stable_mosaic.version = 11 : i64} {
  func.func @_iwae_kernel(%arg0: i32, %arg1: memref<8x128xf32, #tpu.memory_space<vmem>>, %arg2: memref<128x128xf32, #tpu.memory_space<vmem>>, %arg3: memref<1x128xf32, #tpu.memory_space<vmem>>, %arg4: memref<3x8x128xf32, #tpu.memory_space<vmem>>, %arg5: memref<3x8x128xf32, #tpu.memory_space<vmem>>, %arg6: memref<8x128xf32, #tpu.memory_space<vmem>>) attributes {dimension_semantics = [#tpu.dimension_semantics<parallel>], iteration_bounds = array<i64: 1>, scalar_prefetch = 0 : i64, scratch_operands = 0 : i64, tpu.core_type = #tpu.core_type<tc>, window_params = [{transform_indices = @transform_0, window_bounds = array<i64: 8, 128>}, {pipeline_mode = #tpu.pipeline_mode<synchronous>, transform_indices = @transform_1, window_bounds = array<i64: 128, 128>}, {pipeline_mode = #tpu.pipeline_mode<synchronous>, transform_indices = @transform_2, window_bounds = array<i64: 1, 128>}, {transform_indices = @transform_3, window_bounds = array<i64: 3, 8, 128>}, {transform_indices = @transform_4, window_bounds = array<i64: 3, 8, 128>}, {transform_indices = @transform_5, window_bounds = array<i64: 8, 128>}]} {
    %c0 = arith.constant 0 : index
    %c0_0 = arith.constant 0 : index
    %0 = vector.load %arg1[%c0, %c0_0] : memref<8x128xf32, #tpu.memory_space<vmem>>, vector<8x128xf32>
    %c0_1 = arith.constant 0 : index
    %c0_2 = arith.constant 0 : index
    %1 = vector.load %arg2[%c0_1, %c0_2] : memref<128x128xf32, #tpu.memory_space<vmem>>, vector<128x128xf32>
    %cst = arith.constant dense<0.000000e+00> : vector<8x128xf32>
    %2 = tpu.matmul %0, %1, %cst {dimension_numbers = #tpu.dot_dimension_numbers<[1], [0], [0], [1], [0, 0, 1, 1], [], []>} : vector<8x128xf32>, vector<128x128xf32>, vector<8x128xf32> -> vector<8x128xf32>
    %c0_3 = arith.constant 0 : index
    %c0_4 = arith.constant 0 : index
    %3 = vector.load %arg3[%c0_3, %c0_4] : memref<1x128xf32, #tpu.memory_space<vmem>>, vector<1x128xf32>
    %4 = vector.broadcast %3 : vector<1x128xf32> to vector<8x128xf32>
    %5 = arith.addf %2, %4 : vector<8x128xf32>
    %c0_5 = arith.constant 0 : index
    %c0_6 = arith.constant 0 : index
    %6 = vector.load %arg6[%c0_5, %c0_6] : memref<8x128xf32, #tpu.memory_space<vmem>>, vector<8x128xf32>
    tpu.vector_store %arg6[%c0_5, %c0_6], %5 {strides = array<i32>} : memref<8x128xf32, #tpu.memory_space<vmem>>, vector<8x128xf32>,
    %c0_7 = arith.constant 0 : index
    %c0_8 = arith.constant 0 : index
    %c0_9 = arith.constant 0 : index
    %7 = vector.load %arg4[%c0_7, %c0_8, %c0_9] : memref<3x8x128xf32, #tpu.memory_space<vmem>>, vector<3x8x128xf32>
    %cst_10 = arith.constant 0.816496611 : f32
    %8 = vector.broadcast %cst_10 : f32 to vector<3x8x128xf32>
    %9 = arith.mulf %7, %8 : vector<3x8x128xf32>
    %10 = vector.shape_cast %5 : vector<8x128xf32> to vector<1x8x128xf32>
    %11 = vector.broadcast %10 : vector<1x8x128xf32> to vector<3x8x128xf32>
    %12 = arith.addf %9, %11 : vector<3x8x128xf32>
    %c0_11 = arith.constant 0 : index
    %c0_12 = arith.constant 0 : index
    %c0_13 = arith.constant 0 : index
    %13 = vector.load %arg5[%c0_11, %c0_12, %c0_13] : memref<3x8x128xf32, #tpu.memory_space<vmem>>, vector<3x8x128xf32>
    tpu.vector_store %arg5[%c0_11, %c0_12, %c0_13], %12 {strides = array<i32>} : memref<3x8x128xf32, #tpu.memory_space<vmem>>, vector<3x8x128xf32>,
    return
  }
  func.func @transform_0(%arg0: i32) -> (i32, i32) {
    %c0_i32 = arith.constant 0 : i32
    %c0_i32_0 = arith.constant 0 : i32
    return %arg0, %c0_i32 : i32, i32
  }
  func.func @transform_1(%arg0: i32) -> (i32, i32) {
    %c0_i32 = arith.constant 0 : i32
    %c0_i32_0 = arith.constant 0 : i32
    %c0_i32_1 = arith.constant 0 : i32
    return %c0_i32, %c0_i32_0 : i32, i32
  }
  func.func @transform_2(%arg0: i32) -> (i32, i32) {
    %c0_i32 = arith.constant 0 : i32
    %c0_i32_0 = arith.constant 0 : i32
    %c0_i32_1 = arith.constant 0 : i32
    return %c0_i32, %c0_i32_0 : i32, i32
  }
  func.func @transform_3(%arg0: i32) -> (i32, i32, i32) {
    %c0_i32 = arith.constant 0 : i32
    %c0_i32_0 = arith.constant 0 : i32
    %c0_i32_1 = arith.constant 0 : i32
    return %c0_i32, %arg0, %c0_i32_0 : i32, i32, i32
  }
  func.func @transform_4(%arg0: i32) -> (i32, i32, i32) {
    %c0_i32 = arith.constant 0 : i32
    %c0_i32_0 = arith.constant 0 : i32
    %c0_i32_1 = arith.constant 0 : i32
    return %c0_i32, %arg0, %c0_i32_0 : i32, i32, i32
  }
  func.func @transform_5(%arg0: i32) -> (i32, i32) {
    %c0_i32 = arith.constant 0 : i32
    %c0_i32_0 = arith.constant 0 : i32
    return %arg0, %c0_i32 : i32, i32
  }
}

</mosaic_0001>

<llo_original>
// kernel: iwae_forward.1
$region0: #{iwae_forward.1}
  #allocation0 [shape = 'u32[]', space=smem, size = 0x4, offset = 0x4, fixed_abs, tag = 'smem constant byte address 0x4 - core index']
  #allocation1 [shape = 'u32[72,128]{1,0:T(1,128)}', space=vmem, size = 0x9000, scoped, tag = 'internal scratch']
  %s0 = inlined_call_operand.vmem [shape: f32[8,128], index: 0, kind: input, shape index: {}]
  %s1 = inlined_call_operand.vmem [shape: f32[128,128], index: 1, kind: input, shape index: {}]
  %s2 = inlined_call_operand.vmem [shape: f32[1,128], index: 2, kind: input, shape index: {}]
  %s3 = inlined_call_operand.vmem [shape: f32[3,8,128], index: 3, kind: input, shape index: {}]
  %s4 = inlined_call_operand.vmem [shape: f32[3,8,128], index: 4, kind: output, shape index: {0}]
  %s5 = inlined_call_operand.vmem [shape: f32[8,128], index: 5, kind: output, shape index: {1}]
  %6 = xla_tuple %s4, %s5
  %s7 = sld [smem:[#allocation0]]
  $region34: #{iwae_forward.1} parent=0
    _
  %s9 = ssub.s32 1, %s7
  %s10 = scalar_select 0, %s9, %s7
  // Predicated region
  $region2: #{iwae_forward.1} parent=0 // pred_check
    _
  $region3: #{iwae_forward.1} parent=0 // pred_check_branch
    %12 = sbr.rel (0) target = $region5
  $region4: #{iwae_forward.1} parent=0 // pred_region
    _
  $region5: #{iwae_forward.1} parent=0 // pred_fallthru
    _
  // Predicated region
  $region6: #{iwae_forward.1} parent=0 // pred_check
    _
  $region7: #{iwae_forward.1} parent=0 // pred_check_branch
    %14 = sbr.rel (0) target = $region9
  $region8: #{iwae_forward.1} parent=0 // pred_region
    _
  $region9: #{iwae_forward.1} parent=0 // pred_fallthru
    _
  // Predicated region
  $region10: #{iwae_forward.1} parent=0 // pred_check
    _
  $region11: #{iwae_forward.1} parent=0 // pred_check_branch
    %16 = sbr.rel (0) target = $region13
  $region12: #{iwae_forward.1} parent=0 // pred_region
    _
  $region13: #{iwae_forward.1} parent=0 // pred_fallthru
    _
  // Predicated region
  $region14: #{iwae_forward.1} parent=0 // pred_check
    _
  $region15: #{iwae_forward.1} parent=0 // pred_check_branch
    %18 = sbr.rel (0) target = $region17
  $region16: #{iwae_forward.1} parent=0 // pred_region
    _
  $region17: #{iwae_forward.1} parent=0 // pred_fallthru
    _
  %v19 = vld [vmem:[%s0] sm:$0xff]
  %v20 = vld [vmem:[%s1] sm:$0xff]
  %v21 = vld [vmem:[%s1 + $0x8] sm:$0xff]
  %v22 = vld [vmem:[%s1 + $0x10] sm:$0xff]
  %v23 = vld [vmem:[%s1 + $0x18] sm:$0xff]
  %v24 = vld [vmem:[%s1 + $0x20] sm:$0xff]
  %v25 = vld [vmem:[%s1 + $0x28] sm:$0xff]
  %v26 = vld [vmem:[%s1 + $0x30] sm:$0xff]
  %v27 = vld [vmem:[%s1 + $0x38] sm:$0xff]
  %v28 = vld [vmem:[%s1 + $0x40] sm:$0xff]
  %v29 = vld [vmem:[%s1 + $0x48] sm:$0xff]
  %v30 = vld [vmem:[%s1 + $0x50] sm:$0xff]
  %v31 = vld [vmem:[%s1 + $0x58] sm:$0xff]
  %v32 = vld [vmem:[%s1 + $0x60] sm:$0xff]
  %v33 = vld [vmem:[%s1 + $0x68] sm:$0xff]
  %v34 = vld [vmem:[%s1 + $0x70] sm:$0xff]
  %v35 = vld [vmem:[%s1 + $0x78] sm:$0xff]
  %v36 = vld [vmem:[%s2] sm:$0x1]
  %v38 = vperm.slane %v36, 0
  %40 = vmatpush.msra.mxu0 %v35
  %41 = vmatpush.msra.mxu0 %v34
  %42 = vmatpush.msra.mxu0 %v33
  %43 = vmatpush.msra.mxu0 %v32
  %44 = vmatpush.msra.mxu0 %v31
  %45 = vmatpush.msra.mxu0 %v30
  %46 = vmatpush.msra.mxu0 %v29
  %47 = vmatpush.msra.mxu0 %v28
  %48 = vmatpush.msra.mxu0 %v27
  %49 = vmatpush.msra.mxu0 %v26
  %50 = vmatpush.msra.mxu0 %v25
  %51 = vmatpush.msra.mxu0 %v24
  %52 = vmatpush.msra.mxu0 %v23
  %53 = vmatpush.msra.mxu0 %v22
  %54 = vmatpush.msra.mxu0 %v21
  %55 = vmatpush.msra.mxu0 %v20
  %56 = vmatmul.f32.gmra.mxu0 %v19
  %v57 = vpop.f32.mrf.mxu0
  %v58 = vadd.f32 %v38, %v57
  %59 = vdwg.mxu0
  %60 = vst [vmem:[%s5] sm:$0xff] %v58
  %v61 = vld [vmem:[%s3] sm:$0xff]
  %v62 = vld [vmem:[%s3 + $0x8] sm:$0xff]
  %v63 = vld [vmem:[%s3 + $0x10] sm:$0xff]
  %v64 = vmul.f32 %v61, 0.8164966
  %v65 = vmul.f32 %v62, 0.8164966
  %v66 = vmul.f32 %v63, 0.8164966
  %v67 = vadd.f32 %v64, %v58
  %v68 = vadd.f32 %v65, %v58
  %v69 = vadd.f32 %v66, %v58
  %70 = vst [vmem:[%s4] sm:$0xff] %v67
  %71 = vst [vmem:[%s4 + $0x8] sm:$0xff] %v68
  %72 = vst [vmem:[%s4 + $0x10] sm:$0xff] %v69
  // Predicated region
  $region18: #{iwae_forward.1} parent=0 // pred_check
    _
  $region19: #{iwae_forward.1} parent=0 // pred_check_branch
    %74 = sbr.rel (0) target = $region21
  $region20: #{iwae_forward.1} parent=0 // pred_region
    _
  $region21: #{iwae_forward.1} parent=0 // pred_fallthru
    _
  // Predicated region
  $region22: #{iwae_forward.1} parent=0 // pred_check
    _
  $region23: #{iwae_forward.1} parent=0 // pred_check_branch
    %76 = sbr.rel (0) target = $region25
  $region24: #{iwae_forward.1} parent=0 // pred_region
    _
  $region25: #{iwae_forward.1} parent=0 // pred_fallthru
    _
  // Predicated region
  $region26: #{iwae_forward.1} parent=0 // pred_check
    _
  $region27: #{iwae_forward.1} parent=0 // pred_check_branch
    %78 = sbr.rel (0) target = $region29
  $region28: #{iwae_forward.1} parent=0 // pred_region
    _
  $region29: #{iwae_forward.1} parent=0 // pred_fallthru
    _
  // Predicated region
  $region30: #{iwae_forward.1} parent=0 // pred_check
    _
  $region31: #{iwae_forward.1} parent=0 // pred_check_branch
    %80 = sbr.rel (0) target = $region33
  $region32: #{iwae_forward.1} parent=0 // pred_region
    _
  $region33: #{iwae_forward.1} parent=0 // pred_fallthru
    _

</llo_original>
